<compile_context>
chip_gen: v6e
topology: v6e:2x2x1
jax: 0.10.0
libtpu: 0.0.40
codegen_flags: <defaults>
</compile_context>

<pallas_src>
import functools
import inspect
import math

import jax
import jax.numpy as jnp
from jax.experimental import pallas as pl
from jax.experimental.pallas import tpu as pltpu


# ------------------------- feature guards / sizing helpers -------------------------

def _supports_pipeline_mode():
    try:
        return (hasattr(pl, "Buffered")
                and "pipeline_mode" in inspect.signature(pl.BlockSpec).parameters)
    except Exception:
        return False


# Constant-per-grid-step operands: request a single pipeline buffer (no double buffering).
_WEIGHT_PIPELINE = ({"pipeline_mode": pl.Buffered(1)} if _supports_pipeline_mode() else {})


def _physical_vmem_bytes():
    try:
        return int(pltpu.get_tpu_info().vmem_capacity_bytes)
    except Exception:
        return 128 * 1024 * 1024


def _block_vmem_limit(S, H, F):
    # bf16 weights (single-buffered) + double-buffered bf16 x/out + rough f32 working set
    # (q/k/v, scores, x1, hmid), with 50% headroom; capped at 75% of physical VMEM.
    weights = 2 * (4 * H * H + 2 * H * F)
    small_params = 4 * (8 * H + F)
    io = 2 * 2 * 2 * S * H + 2 * 4 * S
    work = 4 * S * (6 * H + F + 2 * S)
    est = int(1.5 * (weights + small_params + io + work)) + (2 << 20)
    cap = int(0.75 * _physical_vmem_bytes())
    return max(min(est, cap), 32 * 1024 * 1024)


# ----------------------------- math helpers (used inside kernels) -----------------------------

def _layernorm(x, gamma, beta, eps=1e-12):
    mean = jnp.mean(x, axis=-1, keepdims=True)
    var = jnp.mean((x - mean) ** 2, axis=-1, keepdims=True)
    return (x - mean) * jax.lax.rsqrt(var + eps) * gamma + beta


def _gelu(x):
    # tanh approximation of GELU (EUP-friendly; avoids erf lowering).
    c = math.sqrt(2.0 / math.pi)
    return 0.5 * x * (1.0 + jnp.tanh(c * (x + 0.044715 * x * x * x)))


# ----------------------------------- Pallas kernels -----------------------------------

def layernorm_kernel(x_ref, g_ref, b_ref, o_ref):
    x = x_ref[...].astype(jnp.float32)
    o_ref[...] = _layernorm(x, g_ref[...], b_ref[...]).astype(o_ref.dtype)


def embedding_layernorm(x2d, gamma, beta, out_dtype=jnp.bfloat16):
    # x2d: [N, H] f32, gamma/beta: [1, H] f32.  Gridded over row tiles so the HBM traffic
    # is pipelined against compute and VMEM use stays bounded at large B*S.
    N, H = x2d.shape
    TM = N if N <= 512 else 512
    return pl.pallas_call(
        layernorm_kernel,
        out_shape=jax.ShapeDtypeStruct((N, H), out_dtype),
        grid=(pl.cdiv(N, TM),),
        in_specs=[pl.BlockSpec((TM, H), lambda i: (i, 0)),
                  pl.BlockSpec((1, H), lambda i: (0, 0), **_WEIGHT_PIPELINE),
                  pl.BlockSpec((1, H), lambda i: (0, 0), **_WEIGHT_PIPELINE)],
        out_specs=pl.BlockSpec((TM, H), lambda i: (i, 0)),
        compiler_params=pltpu.CompilerParams(dimension_semantics=("parallel",)),
    )(x2d, gamma, beta)


def pooler_kernel(x_ref, w_ref, b_ref, o_ref):
    y = jnp.dot(x_ref[...], w_ref[...], preferred_element_type=jnp.float32) + b_ref[...]
    o_ref[...] = jnp.tanh(y)


def pooler(cls_tok, w, b):
    # cls_tok: [B, H] bf16, w: [H, H] bf16, b: [1, H] f32 -> [B, H] f32
    B, H = cls_tok.shape
    return pl.pallas_call(
        pooler_kernel,
        out_shape=jax.ShapeDtypeStruct((B, H), jnp.float32),
    )(cls_tok, w, b)


def transformer_block_kernel(x_ref, mask_ref,
                             wq_ref, bq_ref, wk_ref, bk_ref, wv_ref, bv_ref,
                             wo_ref, bo_ref, g1_ref, be1_ref,
                             w1_ref, b1_ref, w2_ref, b2_ref, g2_ref, be2_ref,
                             o_ref, ctx_ref, *, num_heads):
    x_bf = x_ref[...]                          # [S, H] bf16 residual stream
    S, H = x_bf.shape
    hd = H // num_heads
    x_f32 = x_bf.astype(jnp.float32)

    # Hoist the additive-mask broadcast to [S, S] once (JAX does not CSE broadcast_in_dim;
    # broadcasting inside the head loop would emit num_heads redundant broadcasts).
    add_mask = jnp.broadcast_to(mask_ref[...], (S, S))                    # [S, S] f32

    def proj(w_ref, b_ref):
        # bf16 x bf16 -> f32 accumulation on the MXU.
        return jnp.dot(x_bf, w_ref[...], preferred_element_type=jnp.float32) + b_ref[...]

    q = proj(wq_ref, bq_ref)                   # [S, H] f32
    k = proj(wk_ref, bk_ref)
    v = proj(wv_ref, bv_ref)

    # Fold 1/sqrt(hd) into q once (one [S,H] mul instead of num_heads [S,S] muls).
    qb = (q * (1.0 / math.sqrt(hd))).astype(jnp.bfloat16)
    kb = k.astype(jnp.bfloat16)
    vb = v.astype(jnp.bfloat16)

    # Per-head attention; each head writes its context slice directly into a VMEM scratch
    # (no concatenate -> no extra relayout copies).
    # TODO(synk): pack heads block-diagonally (or grid over head groups) so the 64-wide
    # contraction fills the 128/256-wide MXU; left as-is to keep the kernel simple.
    for h in range(num_heads):
        lo, hi = h * hd, (h + 1) * hd
        qh, kh, vh = qb[:, lo:hi], kb[:, lo:hi], vb[:, lo:hi]             # [S, hd] bf16
        scores = jnp.einsum('qd,kd->qk', qh, kh,
                            preferred_element_type=jnp.float32) + add_mask  # [S, S] f32
        m = jnp.max(scores, axis=-1, keepdims=True)
        p = jnp.exp(scores - m)
        # denom >= 1 always (the row max contributes exp(0) = 1), so the approximate
        # reciprocal is safe even for fully-masked rows (matches softmax-of-uniform there).
        denom = jnp.sum(p, axis=-1, keepdims=True)
        p = (p * pl.reciprocal(denom, approx=True)).astype(jnp.bfloat16)
        ctx_ref[:, pl.ds(lo, hd)] = jnp.dot(
            p, vh, preferred_element_type=jnp.float32).astype(jnp.bfloat16)

    attn_out = jnp.dot(ctx_ref[...], wo_ref[...],
                       preferred_element_type=jnp.float32) + bo_ref[...]
    # TODO(synk): dropout layers are identity here (eval-mode forward).
    x1 = _layernorm(x_f32 + attn_out, g1_ref[...], be1_ref[...])          # [S, H] f32

    hmid = _gelu(jnp.dot(x1.astype(jnp.bfloat16), w1_ref[...],
                         preferred_element_type=jnp.float32) + b1_ref[...])
    ff = jnp.dot(hmid.astype(jnp.bfloat16), w2_ref[...],
                 preferred_element_type=jnp.float32) + b2_ref[...]
    o_ref[...] = _layernorm(x1 + ff, g2_ref[...], be2_ref[...]).astype(o_ref.dtype)


def transformer_block(x, add_mask, lp, num_heads):
    # x: [B, S, H] bf16, add_mask: [B, 1, S] f32 (additive, already (1-mask)*-1e18)
    B, S, H = x.shape
    F = lp['w1'].shape[1]

    def wspec(shape):
        # Weights / biases / LN params are constant across the batch grid -> single buffer.
        return pl.BlockSpec(shape, lambda b: (0, 0), **_WEIGHT_PIPELINE)

    in_specs = [
        pl.BlockSpec((None, S, H), lambda b: (b, 0, 0)),   # x        -> kernel sees [S, H]
        pl.BlockSpec((None, 1, S), lambda b: (b, 0, 0)),   # add mask -> kernel sees [1, S]
        wspec((H, H)), wspec((1, H)),                      # Wq, bq
        wspec((H, H)), wspec((1, H)),                      # Wk, bk
        wspec((H, H)), wspec((1, H)),                      # Wv, bv
        wspec((H, H)), wspec((1, H)),                      # Wo, bo
        wspec((1, H)), wspec((1, H)),                      # ln1 gamma, beta
        wspec((H, F)), wspec((1, F)),                      # W1, b1
        wspec((F, H)), wspec((1, H)),                      # W2, b2
        wspec((1, H)), wspec((1, H)),                      # ln2 gamma, beta
    ]
    out_spec = pl.BlockSpec((None, S, H), lambda b: (b, 0, 0))

    kernel = functools.partial(transformer_block_kernel, num_heads=num_heads)
    return pl.pallas_call(
        kernel,
        out_shape=jax.ShapeDtypeStruct((B, S, H), jnp.bfloat16),
        grid=(B,),
        in_specs=in_specs,
        out_specs=out_spec,
        scratch_shapes=[pltpu.VMEM((S, H), jnp.bfloat16)],     # attention context buffer
        compiler_params=pltpu.CompilerParams(
            dimension_semantics=("parallel",),
            vmem_limit_bytes=_block_vmem_limit(S, H, F)),
    )(x, add_mask,
      lp['wq'], lp['bq'], lp['wk'], lp['bk'], lp['wv'], lp['bv'],
      lp['wo'], lp['bo'], lp['ln1_g'], lp['ln1_b'],
      lp['w1'], lp['b1'], lp['w2'], lp['b2'], lp['ln2_g'], lp['ln2_b'])


# ----------------------------------- parameter init -----------------------------------

def init_params(key, config):
    H = config['hidden_size']
    F = config['intermediate_size']
    V = config['vocab_size']
    P = config['max_position_embeddings']
    T = config['type_vocab_size']
    L = config['num_layers']

    def nrm(k, shape, dtype=jnp.float32):
        return (jax.random.normal(k, shape, dtype=jnp.float32) * 0.02).astype(dtype)

    keys = jax.random.split(key, 4 + L)
    params = {
        'word_emb': nrm(keys[0], (V, H)),                  # gathered by XLA, kept f32
        'pos_emb': nrm(keys[1], (P, H)),
        'type_emb': nrm(keys[2], (T, H)),
        'emb_ln_g': jnp.ones((1, H), jnp.float32),
        'emb_ln_b': jnp.zeros((1, H), jnp.float32),
        'pooler_w': nrm(keys[3], (H, H), jnp.bfloat16),    # matmul weights stored bf16
        'pooler_b': jnp.zeros((1, H), jnp.float32),
        'layers': [],
    }
    for li in range(L):
        lk = jax.random.split(keys[4 + li], 6)
        params['layers'].append({
            'wq': nrm(lk[0], (H, H), jnp.bfloat16), 'bq': jnp.zeros((1, H), jnp.float32),
            'wk': nrm(lk[1], (H, H), jnp.bfloat16), 'bk': jnp.zeros((1, H), jnp.float32),
            'wv': nrm(lk[2], (H, H), jnp.bfloat16), 'bv': jnp.zeros((1, H), jnp.float32),
            'wo': nrm(lk[3], (H, H), jnp.bfloat16), 'bo': jnp.zeros((1, H), jnp.float32),
            'ln1_g': jnp.ones((1, H), jnp.float32), 'ln1_b': jnp.zeros((1, H), jnp.float32),
            'w1': nrm(lk[4], (H, F), jnp.bfloat16), 'b1': jnp.zeros((1, F), jnp.float32),
            'w2': nrm(lk[5], (F, H), jnp.bfloat16), 'b2': jnp.zeros((1, H), jnp.float32),
            'ln2_g': jnp.ones((1, H), jnp.float32), 'ln2_b': jnp.zeros((1, H), jnp.float32),
        })
    return params


# ----------------------------------- forward (glue + kernels) -----------------------------------

def bert_forward(params, sentences, sentence_type, sentence_mask, config):
    H = config['hidden_size']
    B, S = sentences.shape

    # Embeddings: word + position + token-type (XLA gathers), then LayerNorm (Pallas, tiled).
    emb = (params['word_emb'][sentences]
           + params['pos_emb'][jnp.arange(S)][None, :, :]
           + params['type_emb'][sentence_type])
    x = embedding_layernorm(emb.reshape(B * S, H),
                            params['emb_ln_g'], params['emb_ln_b']).reshape(B, S, H)
    # x is the bf16 residual stream (halves inter-layer HBM traffic).
    # TODO(synk): embedding dropout is identity in eval mode.

    # extended_attention_mask = (1.0 - mask[:, None, None, :]) * -1e18  (additive)
    add_mask = ((1.0 - sentence_mask) * -1e18).astype(jnp.float32)[:, None, :]  # [B, 1, S]

    # TODO(synk): for small B on v7x, grid over (B, query tiles) would feed both TensorCores.
    for lp in params['layers']:
        x = transformer_block(x, add_mask, lp, config['num_attention_heads'])

    pooled = pooler(x[:, 0, :], params['pooler_w'], params['pooler_b'])   # [B, H] f32
    saved_output = x.astype(jnp.float32)                                  # match module's f32 output
    return saved_output, pooled


# ----------------------------------- main -----------------------------------

if __name__ == "__main__":
    config = {
        'hidden_size': 32,
        'num_layers': 2,
        'num_attention_heads': 4,
        'intermediate_size': 128,
        'vocab_size': 100,
        'max_position_embeddings': 64,
        'type_vocab_size': 2,
    }

    key = jax.random.PRNGKey(0)
    kp, ks, kt = jax.random.split(key, 3)
    params = init_params(kp, config)

    B, S = 2, 8
    sentences = jax.random.randint(ks, (B, S), 0, config['vocab_size'], dtype=jnp.int32)
    sentence_type = jax.random.randint(kt, (B, S), 0, config['type_vocab_size'], dtype=jnp.int32)
    # padding mask: sequence 0 fully valid, sequence 1 has 3 padded positions
    lengths = jnp.array([8, 5], dtype=jnp.int32)
    sentence_mask = (jnp.arange(S)[None, :] < lengths[:, None]).astype(jnp.float32)

    saved_output, pooled = bert_forward(params, sentences, sentence_type, sentence_mask, config)
    jax.block_until_ready((saved_output, pooled))

    assert saved_output.shape == (B, S, config['hidden_size'])
    assert pooled.shape == (B, config['hidden_size'])
    assert saved_output.dtype == jnp.float32 and pooled.dtype == jnp.float32
    assert bool(jnp.all(jnp.isfinite(saved_output))) and bool(jnp.all(jnp.isfinite(pooled)))
    print("KERNEL_OK")
</pallas_src>

<mosaic_0001>
module attributes {stable_mosaic.version = 11 : i64} {
  func.func @layernorm_kernel(%arg0: i32, %arg1: memref<16x32xf32, #tpu.memory_space<vmem>>, %arg2: memref<1x32xf32, #tpu.memory_space<vmem>>, %arg3: memref<1x32xf32, #tpu.memory_space<vmem>>, %arg4: memref<16x32xbf16, #tpu.memory_space<vmem>>) attributes {dimension_semantics = [#tpu.dimension_semantics<parallel>], iteration_bounds = array<i64: 1>, scalar_prefetch = 0 : i64, scratch_operands = 0 : i64, tpu.core_type = #tpu.core_type<tc>, window_params = [{transform_indices = @transform_0, window_bounds = array<i64: 16, 32>}, {pipeline_mode = #tpu.pipeline_mode<synchronous>, transform_indices = @transform_1, window_bounds = array<i64: 1, 32>}, {pipeline_mode = #tpu.pipeline_mode<synchronous>, transform_indices = @transform_2, window_bounds = array<i64: 1, 32>}, {transform_indices = @transform_3, window_bounds = array<i64: 16, 32>}]} {
    %c0 = arith.constant 0 : index
    %c0_0 = arith.constant 0 : index
    %0 = vector.load %arg1[%c0, %c0_0] : memref<16x32xf32, #tpu.memory_space<vmem>>, vector<16x32xf32>
    %c0_1 = arith.constant 0 : index
    %c0_2 = arith.constant 0 : index
    %1 = vector.load %arg2[%c0_1, %c0_2] : memref<1x32xf32, #tpu.memory_space<vmem>>, vector<1x32xf32>
    %c0_3 = arith.constant 0 : index
    %c0_4 = arith.constant 0 : index
    %2 = vector.load %arg3[%c0_3, %c0_4] : memref<1x32xf32, #tpu.memory_space<vmem>>, vector<1x32xf32>
    %cst = arith.constant dense<0.000000e+00> : vector<16xf32>
    %3 = vector.multi_reduction <add>, %0, %cst [1] : vector<16x32xf32> to vector<16xf32>
    %4 = vector.shape_cast %3 : vector<16xf32> to vector<16x1xf32>
    %cst_5 = arith.constant 3.200000e+01 : f32
    %5 = vector.broadcast %cst_5 : f32 to vector<16x1xf32>
    %6 = arith.divf %4, %5 : vector<16x1xf32>
    %7 = vector.broadcast %6 : vector<16x1xf32> to vector<16x32xf32>
    %8 = arith.subf %0, %7 : vector<16x32xf32>
    %9 = arith.mulf %8, %8 : vector<16x32xf32>
    %cst_6 = arith.constant dense<0.000000e+00> : vector<16xf32>
    %10 = vector.multi_reduction <add>, %9, %cst_6 [1] : vector<16x32xf32> to vector<16xf32>
    %11 = vector.shape_cast %10 : vector<16xf32> to vector<16x1xf32>
    %cst_7 = arith.constant 3.200000e+01 : f32
    %12 = vector.broadcast %cst_7 : f32 to vector<16x1xf32>
    %13 = arith.divf %11, %12 : vector<16x1xf32>
    %14 = vector.broadcast %6 : vector<16x1xf32> to vector<16x32xf32>
    %15 = arith.subf %0, %14 : vector<16x32xf32>
    %cst_8 = arith.constant 9.99999996E-13 : f32
    %16 = vector.broadcast %cst_8 : f32 to vector<16x1xf32>
    %17 = arith.addf %13, %16 : vector<16x1xf32>
    %18 = math.rsqrt %17 : vector<16x1xf32>
    %19 = vector.broadcast %18 : vector<16x1xf32> to vector<16x32xf32>
    %20 = arith.mulf %15, %19 : vector<16x32xf32>
    %21 = vector.broadcast %1 : vector<1x32xf32> to vector<16x32xf32>
    %22 = arith.mulf %20, %21 : vector<16x32xf32>
    %23 = vector.broadcast %2 : vector<1x32xf32> to vector<16x32xf32>
    %24 = arith.addf %22, %23 : vector<16x32xf32>
    %25 = arith.truncf %24 : vector<16x32xf32> to vector<16x32xbf16>
    %c0_9 = arith.constant 0 : index
    %c0_10 = arith.constant 0 : index
    %26 = vector.load %arg4[%c0_9, %c0_10] : memref<16x32xbf16, #tpu.memory_space<vmem>>, vector<16x32xbf16>
    tpu.vector_store %arg4[%c0_9, %c0_10], %25 {strides = array<i32>} : memref<16x32xbf16, #tpu.memory_space<vmem>>, vector<16x32xbf16>,
    return
  }
  func.func @transform_0(%arg0: i32) -> (i32, i32) {
    %c0_i32 = arith.constant 0 : i32
    %c0_i32_0 = arith.constant 0 : i32
    return %arg0, %c0_i32 : i32, i32
  }
  func.func @transform_1(%arg0: i32) -> (i32, i32) {
    %c0_i32 = arith.constant 0 : i32
    %c0_i32_0 = arith.constant 0 : i32
    %c0_i32_1 = arith.constant 0 : i32
    return %c0_i32, %c0_i32_0 : i32, i32
  }
  func.func @transform_2(%arg0: i32) -> (i32, i32) {
    %c0_i32 = arith.constant 0 : i32
    %c0_i32_0 = arith.constant 0 : i32
    %c0_i32_1 = arith.constant 0 : i32
    return %c0_i32, %c0_i32_0 : i32, i32
  }
  func.func @transform_3(%arg0: i32) -> (i32, i32) {
    %c0_i32 = arith.constant 0 : i32
    %c0_i32_0 = arith.constant 0 : i32
    return %arg0, %c0_i32 : i32, i32
  }
}

</mosaic_0001>

<llo_original>
// kernel: tpu_custom_call.1
$region0: #{tpu_custom_call.1}
  #allocation0 [shape = 'u32[]', space=smem, size = 0x4, offset = 0x4, fixed_abs, tag = 'smem constant byte address 0x4 - core index']
  #allocation1 [shape = 'u32[144,128]{1,0:T(1,128)}', space=vmem, size = 0x12000, scoped, tag = 'internal scratch']
  %s0 = inlined_call_operand.hbm [shape: f32[16,32], index: 0, kind: input, shape index: {}]
  %s1 = inlined_call_operand.vmem [shape: f32[1,32], index: 1, kind: input, shape index: {}]
  %s2 = inlined_call_operand.vmem [shape: f32[1,32], index: 2, kind: input, shape index: {}]
  %s3 = inlined_call_operand.hbm [shape: bf16[16,32], index: 3, kind: output, shape index: {}]
  %s4 = sld [smem:[#allocation0]]
  $region26: #{tpu_custom_call.1} parent=0
    _
  %s6 = ssub.s32 1, %s4
  %s7 = scalar_select 0, %s6, %s4
  $region1: #{tpu_custom_call.1} parent=0
    #allocation2 [shape = 'u8[8192]{0}', space=vmem, size = 0x2000, scoped, tag = 'input window, operand 0, single buffered']
    #allocation3 [shape = 's32[1]{0}', space=sflag, size = 0x4, scoped, tag = 'scoped memory for tpu_custom_call.1']
    #allocation4 [shape = 's32[1]{0}', space=sflag, size = 0x4, scoped, tag = 'scoped memory for tpu_custom_call.1']
    #allocation5 [shape = 'u8[4096]{0}', space=vmem, size = 0x1000, scoped, tag = 'output window, operand 0, single buffered']
    %8 = vsyncpa [#allocation3], 0
    %9 = vsyncpa [#allocation4], 0
    // Predicated region
    $region2: #{tpu_custom_call.1} parent=1 // pred_check
      _
    $region3: #{tpu_custom_call.1} parent=1 // pred_check_branch
      %11 = sbr.rel (0) target = $region5
    $region4: #{tpu_custom_call.1} parent=1 // pred_region
      %s13 = ssub.s32 256, 256
      %14 = vsyncadd [#allocation3], %s13
      %s15 = sshll.u32 [#allocation2], 4
      %s16 = int_to_ptr.vmem [resolvable:$true] %s15
      %21 = dma.hbm_to_vmem [thread:$0]  %s0, 256, %s16, [#allocation3], 128, 128, 8
    $region5: #{tpu_custom_call.1} parent=1 // pred_fallthru
      _
    // Predicated region
    $region6: #{tpu_custom_call.1} parent=1 // pred_check
      _
    $region7: #{tpu_custom_call.1} parent=1 // pred_check_branch
      %23 = sbr.rel (0) target = $region9
    $region8: #{tpu_custom_call.1} parent=1 // pred_region
      _
    $region9: #{tpu_custom_call.1} parent=1 // pred_fallthru
      _
    // Predicated region
    $region10: #{tpu_custom_call.1} parent=1 // pred_check
      _
    $region11: #{tpu_custom_call.1} parent=1 // pred_check_branch
      %25 = sbr.rel (0) target = $region13
    $region12: #{tpu_custom_call.1} parent=1 // pred_region
      _
    $region13: #{tpu_custom_call.1} parent=1 // pred_fallthru
      _
    // Predicated region
    $region14: #{tpu_custom_call.1} parent=1 // pred_check
      _
    $region15: #{tpu_custom_call.1} parent=1 // pred_check_branch
      %27 = sbr.rel (0) target = $region17
    $region16: #{tpu_custom_call.1} parent=1 // pred_region
      %28 = dma.done [#allocation3], 256
    $region17: #{tpu_custom_call.1} parent=1 // pred_fallthru
      _
    %v29 = vld [vmem:[#allocation2] sm:$0xff]
    %v30 = vld [vmem:[#allocation2 + $0x8] sm:$0xff]
    %v31 = vld [vmem:[%s1] sm:$0x1]
    %v32 = vld [vmem:[%s2] sm:$0x1]
    %vm33 = vcmask 261120
    %v34 = vsel %vm33, %v29, 0.0
    %35 = vadd.xlane.f32.xlu0 %v34
    %v36 = vpop.xlane.xlu0 %35
    %v37 = vsel %vm33, %v30, 0.0
    %38 = vadd.xlane.f32.xlu0 %v37
    %v39 = vpop.xlane.xlu0 %38
    %v40 = vrcp.pop 32.0
    %v41 = vmul.f32 %v36, %v40
    %v42 = vmul.f32 %v39, %v40
    %v43 = vsub.f32 %v29, %v41
    %v44 = vsub.f32 %v30, %v42
    %v45 = vmul.f32 %v43, %v43
    %v46 = vmul.f32 %v44, %v44
    %v47 = vsel %vm33, %v45, 0.0
    %48 = vadd.xlane.f32.xlu0 %v47
    %v49 = vpop.xlane.xlu0 %48
    %v50 = vsel %vm33, %v46, 0.0
    %51 = vadd.xlane.f32.xlu0 %v50
    %v52 = vpop.xlane.xlu0 %51
    %v53 = vmul.f32 %v49, %v40
    %v54 = vmul.f32 %v52, %v40
    %v55 = vadd.f32 %v53, 1e-12
    %v56 = vadd.f32 %v54, 1e-12
    %v57 = vrsqrt.pop %v55
    %v58 = vrsqrt.pop %v56
    %v59 = vmul.f32 %v43, %v57
    %v60 = vmul.f32 %v44, %v58
    %v62 = vlaneseq
    %v63 = vshrl.u32 %v62, 7
    %v64 = vsub.s32 0, %v63
    %v65 = vrot.slane %v31, %v64
    %v67 = vmul.f32 %v59, %v65
    %v68 = vmul.f32 %v60, %v65
    %v70 = vlaneseq
    %v71 = vshrl.u32 %v70, 7
    %v72 = vsub.s32 0, %v71
    %v73 = vrot.slane %v32, %v72
    %v75 = vadd.f32 %v67, %v73
    %v76 = vadd.f32 %v68, %v73
    %v77 = vpack.c.bf16 %v76, %v75
    %v79 = vunpack.c.l.b16 %v77
    %v80 = vunpack.c.h.b16 %v77
    %v81 = vpack.c.b16 %v79, %v79
    %v82 = vpack.c.b16 %v80, %v80
    %vm85 = vcmask 257024
    %86 = vst.msk [vmem:[#allocation5] sm:$0xf] %vm85, %v81
    %87 = vst.msk [vmem:[#allocation5 + $0x4] sm:$0xf] %vm85, %v82
    // Predicated region
    $region18: #{tpu_custom_call.1} parent=1 // pred_check
      _
    $region19: #{tpu_custom_call.1} parent=1 // pred_check_branch
      %89 = sbr.rel (0) target = $region21
    $region20: #{tpu_custom_call.1} parent=1 // pred_region
      %s91 = ssub.s32 128, 128
      %92 = vsyncadd [#allocation4], %s91
      %s93 = sshll.u32 [#allocation5], 4
      %s94 = int_to_ptr.vmem [resolvable:$true] %s93
      %99 = dma.vmem_to_hbm [thread:$0]  %s94, 128, %s3, [#allocation4], 64, 64, 4
    $region21: #{tpu_custom_call.1} parent=1 // pred_fallthru
      _
    // Predicated region
    $region22: #{tpu_custom_call.1} parent=1 // pred_check
      _
    $region23: #{tpu_custom_call.1} parent=1 // pred_check_branch
      %101 = sbr.rel (0) target = $region25
    $region24: #{tpu_custom_call.1} parent=1 // pred_region
      %102 = dma.done [#allocation4], 128
    $region25: #{tpu_custom_call.1} parent=1 // pred_fallthru
      _
    %103 = vsyncpa [#allocation3], 1
    %104 = vsyncpa [#allocation4], 1

</llo_original>
